<compile_context>
chip_gen: v7x
topology: tpu7x:2x2x1
jax: 0.10.0
libtpu: 0.0.40
codegen_flags: <defaults>
</compile_context>

<pallas_src>
import jax
import jax.numpy as jnp
from jax.experimental import pallas as pl
from jax.experimental.pallas import tpu as pltpu


def discriminator_kernel(x_ref, w1_ref, w2_ref, p_ref, b3_ref, o_ref):
    # x_ref: (TB, F) bf16 batch tile.  w1_ref: (F, H) bf16.  w2_ref: (H, H) bf16.
    # p_ref: (3, H) f32 packed params -> row 0: b1, row 1: b2, row 2: w3 (row form of (H,1)).
    # b3_ref: (1,) f32 scalar in SMEM.  o_ref: (1, TB) f32 lane-dense logits row.
    b1 = p_ref[0:1, :]
    b2 = p_ref[1:2, :]
    w3 = p_ref[2:3, :]

    # Layer 1: bf16 MXU matmul with f32 accumulation; bias + ReLU in f32 on the VPU.
    h1 = jnp.dot(x_ref[...], w1_ref[...], preferred_element_type=jnp.float32) + b1
    h1 = jnp.maximum(h1, 0.0)

    # Layer 2: cast activation to bf16 for the MXU, accumulate f32, bias + ReLU in f32.
    h2 = jnp.dot(h1.astype(jnp.bfloat16), w2_ref[...],
                 preferred_element_type=jnp.float32) + b2
    h2 = jnp.maximum(h2, 0.0)

    # Layer 3 (H -> 1): VPU multiply + lane reduction in f32 (no lane-sparse MXU matmul).
    logits = jnp.sum(h2 * w3, axis=-1) + b3_ref[0]          # (TB,)

    # Lane-dense store: batch on the lane axis; reshaped to (B, 1) in the wrapper.
    o_ref[...] = logits[None, :].astype(o_ref.dtype)         # (1, TB)


def _pick_tile_b(B):
    # For B >= 256 with a 128-aligned batch, split into >=2 grid steps so the
    # "parallel" axis can shard across v7x's two TensorCores (one extra ~0.35us
    # grid step is harmless on single-TC v5e/v6e).  tile_b stays a multiple of 128
    # so the (1, tile_b) output store remains an unmasked lane-dense vst.
    if B >= 256 and B % 128 == 0:
        cands = [t for t in range(128, min(512, B // 2) + 1, 128) if B % t == 0]
        if cands:
            return cands[-1]
    return B


def discriminator(x, w1, b1, w2, b2, w3_row, b3, *, tile_b=None):
    """x: (B, F); w1: (F, H); b1: (1, H); w2: (H, H); b2: (1, H);
    w3_row: (1, H) row form of the (H, 1) output weight; b3: (1,) scalar.
    Returns f32 logits of shape (B, 1)."""
    B, F = x.shape
    H = w1.shape[1]
    assert w2.shape == (H, H) and w3_row.shape == (1, H)
    assert b1.shape == (1, H) and b2.shape == (1, H) and b3.shape == (1,)

    if tile_b is None:
        tile_b = _pick_tile_b(B)
    assert B % tile_b == 0, "batch must be divisible by tile_b"
    num_tiles = B // tile_b

    # bf16 MXU inputs (f32 accumulation happens inside the kernel).
    x_bf = x.astype(jnp.bfloat16)
    w1_bf = w1.astype(jnp.bfloat16)
    w2_bf = w2.astype(jnp.bfloat16)
    # Pack the three (1, H) f32 parameter rows into one replicated block.
    params = jnp.concatenate([b1, b2, w3_row], axis=0).astype(jnp.float32)   # (3, H)
    b3 = b3.astype(jnp.float32)

    # Replicated parameter blocks: constant index_map -> single-buffer them.
    def rep(shape):
        return pl.BlockSpec(shape, lambda i: (0, 0),
                            pipeline_mode=pl.Buffered(buffer_count=1))

    # Explicit VMEM budget (bytes): double-buffered x tile + single-buffered weights
    # + packed params + double-buffered output row, with headroom for compiler scratch.
    vmem_budget = (2 * tile_b * F * 2                 # x tile (bf16, 2 buffers)
                   + (F * H + H * H) * 2              # W1 + W2 (bf16, Buffered(1))
                   + 3 * H * 4                        # packed b1/b2/w3 (f32)
                   + 2 * tile_b * 4)                  # output row (f32, 2 buffers)
    vmem_limit = int(vmem_budget * 2) + (4 << 20)

    # Advisory cost so XLA overlaps this tiny latency-bound kernel with neighbors.
    cost = pl.CostEstimate(
        flops=2 * B * (F * H + H * H) + 2 * B * H,
        transcendentals=0,
        bytes_accessed=(B * F * 2 + (F * H + H * H) * 2 + 3 * H * 4 + 4 + B * 4),
    )

    out = pl.pallas_call(
        discriminator_kernel,
        out_shape=jax.ShapeDtypeStruct((num_tiles, tile_b), jnp.float32),
        grid_spec=pltpu.PrefetchScalarGridSpec(
            num_scalar_prefetch=0,
            grid=(num_tiles,),
            in_specs=[
                pl.BlockSpec((tile_b, F), lambda i: (i, 0)),        # x  (batch-tiled, bf16)
                rep((F, H)),                                        # W1 (bf16)
                rep((H, H)),                                        # W2 (bf16)
                rep((3, H)),                                        # packed b1/b2/w3 (f32)
                pl.BlockSpec(memory_space=pltpu.MemorySpace.SMEM),  # b3 scalar
            ],
            out_specs=pl.BlockSpec((1, tile_b), lambda i: (i, 0)),  # lane-dense logits
        ),
        compiler_params=pltpu.CompilerParams(
            dimension_semantics=("parallel",),
            vmem_limit_bytes=vmem_limit),
        cost_estimate=cost,
    )(x_bf, w1_bf, w2_bf, params, b3)

    return out.reshape(B, 1)


def discriminator_ref(x, w1, b1, w2, b2, w3_row, b3):
    h1 = jnp.maximum(x @ w1 + b1, 0.0)
    h2 = jnp.maximum(h1 @ w2 + b2, 0.0)
    return h2 @ w3_row.T + b3


if __name__ == "__main__":
    B, INPUT_DIM, HIDDEN_DIM = 16, 32, 128  # hidden chosen lane-aligned (multiple of 128)

    key = jax.random.PRNGKey(0)
    k_x, k_w1, k_b1, k_w2, k_b2, k_w3, k_b3 = jax.random.split(key, 7)

    transition = jax.random.normal(k_x, (B, INPUT_DIM), dtype=jnp.float32)

    lim1 = 1.0 / jnp.sqrt(INPUT_DIM)
    w1 = jax.random.uniform(k_w1, (INPUT_DIM, HIDDEN_DIM),
                            minval=-lim1, maxval=lim1, dtype=jnp.float32)
    b1 = jax.random.uniform(k_b1, (1, HIDDEN_DIM),
                            minval=-lim1, maxval=lim1, dtype=jnp.float32)

    lim2 = 1.0 / jnp.sqrt(HIDDEN_DIM)
    w2 = jax.random.uniform(k_w2, (HIDDEN_DIM, HIDDEN_DIM),
                            minval=-lim2, maxval=lim2, dtype=jnp.float32)
    b2 = jax.random.uniform(k_b2, (1, HIDDEN_DIM),
                            minval=-lim2, maxval=lim2, dtype=jnp.float32)

    w3_row = jax.random.uniform(k_w3, (1, HIDDEN_DIM),
                                minval=-lim2, maxval=lim2, dtype=jnp.float32)
    b3 = jax.random.uniform(k_b3, (1,),
                            minval=-lim2, maxval=lim2, dtype=jnp.float32)

    out = discriminator(transition, w1, b1, w2, b2, w3_row, b3)
    out = jax.block_until_ready(out)

    ref = discriminator_ref(transition, w1, b1, w2, b2, w3_row, b3)
    assert out.shape == (B, 1)
    # bf16 MXU inputs -> tolerance relaxed vs. the pure-f32 version.
    assert jnp.allclose(out, ref, atol=1e-2, rtol=1e-2), (
        float(jnp.max(jnp.abs(out - ref))))

    # TODO(synk): dist='binary' (Bernoulli distribution wrapper) and spectral_norm
    # reparameterization have no Pallas equivalent; kernel returns raw logits.
    print("KERNEL_OK")
</pallas_src>

<mosaic_0001>
module attributes {stable_mosaic.version = 11 : i64} {
  func.func @discriminator_kernel(%arg0: i32, %arg1: memref<16x32xbf16, #tpu.memory_space<vmem>>, %arg2: memref<32x128xbf16, #tpu.memory_space<vmem>>, %arg3: memref<128x128xbf16, #tpu.memory_space<vmem>>, %arg4: memref<3x128xf32, #tpu.memory_space<vmem>>, %arg5: memref<1xf32, #tpu.memory_space<smem>>, %arg6: memref<1x16xf32, #tpu.memory_space<vmem>>) attributes {dimension_semantics = [#tpu.dimension_semantics<parallel>], iteration_bounds = array<i64: 1>, scalar_prefetch = 0 : i64, scratch_operands = 0 : i64, tpu.core_type = #tpu.core_type<tc>, window_params = [{transform_indices = @transform_0, window_bounds = array<i64: 16, 32>}, {pipeline_mode = #tpu.pipeline_mode<synchronous>, transform_indices = @transform_1, window_bounds = array<i64: 32, 128>}, {pipeline_mode = #tpu.pipeline_mode<synchronous>, transform_indices = @transform_2, window_bounds = array<i64: 128, 128>}, {pipeline_mode = #tpu.pipeline_mode<synchronous>, transform_indices = @transform_3, window_bounds = array<i64: 3, 128>}, {transform_indices = @transform_4, window_bounds = array<i64: 1>}, {transform_indices = @transform_5, window_bounds = array<i64: 1, 16>}]} {
    %c0 = arith.constant 0 : index
    %c0_0 = arith.constant 0 : index
    %0 = vector.load %arg4[%c0, %c0_0] : memref<3x128xf32, #tpu.memory_space<vmem>>, vector<1x128xf32>
    %c1 = arith.constant 1 : index
    %c0_1 = arith.constant 0 : index
    %1 = vector.load %arg4[%c1, %c0_1] : memref<3x128xf32, #tpu.memory_space<vmem>>, vector<1x128xf32>
    %c2 = arith.constant 2 : index
    %c0_2 = arith.constant 0 : index
    %2 = vector.load %arg4[%c2, %c0_2] : memref<3x128xf32, #tpu.memory_space<vmem>>, vector<1x128xf32>
    %c0_3 = arith.constant 0 : index
    %c0_4 = arith.constant 0 : index
    %3 = vector.load %arg1[%c0_3, %c0_4] : memref<16x32xbf16, #tpu.memory_space<vmem>>, vector<16x32xbf16>
    %c0_5 = arith.constant 0 : index
    %c0_6 = arith.constant 0 : index
    %4 = vector.load %arg2[%c0_5, %c0_6] : memref<32x128xbf16, #tpu.memory_space<vmem>>, vector<32x128xbf16>
    %cst = arith.constant dense<0.000000e+00> : vector<16x128xf32>
    %5 = tpu.matmul %3, %4, %cst {dimension_numbers = #tpu.dot_dimension_numbers<[1], [0], [0], [1], [0, 0, 1, 1], [], []>} : vector<16x32xbf16>, vector<32x128xbf16>, vector<16x128xf32> -> vector<16x128xf32>
    %6 = vector.broadcast %0 : vector<1x128xf32> to vector<16x128xf32>
    %7 = arith.addf %5, %6 : vector<16x128xf32>
    %cst_7 = arith.constant 0.000000e+00 : f32
    %8 = vector.broadcast %cst_7 : f32 to vector<16x128xf32>
    %9 = arith.maximumf %7, %8 : vector<16x128xf32>
    %10 = arith.truncf %9 : vector<16x128xf32> to vector<16x128xbf16>
    %c0_8 = arith.constant 0 : index
    %c0_9 = arith.constant 0 : index
    %11 = vector.load %arg3[%c0_8, %c0_9] : memref<128x128xbf16, #tpu.memory_space<vmem>>, vector<128x128xbf16>
    %cst_10 = arith.constant dense<0.000000e+00> : vector<16x128xf32>
    %12 = tpu.matmul %10, %11, %cst_10 {dimension_numbers = #tpu.dot_dimension_numbers<[1], [0], [0], [1], [0, 0, 1, 1], [], []>} : vector<16x128xbf16>, vector<128x128xbf16>, vector<16x128xf32> -> vector<16x128xf32>
    %13 = vector.broadcast %1 : vector<1x128xf32> to vector<16x128xf32>
    %14 = arith.addf %12, %13 : vector<16x128xf32>
    %cst_11 = arith.constant 0.000000e+00 : f32
    %15 = vector.broadcast %cst_11 : f32 to vector<16x128xf32>
    %16 = arith.maximumf %14, %15 : vector<16x128xf32>
    %17 = vector.broadcast %2 : vector<1x128xf32> to vector<16x128xf32>
    %18 = arith.mulf %16, %17 : vector<16x128xf32>
    %cst_12 = arith.constant dense<0.000000e+00> : vector<16xf32>
    %19 = vector.multi_reduction <add>, %18, %cst_12 [1] : vector<16x128xf32> to vector<16xf32>
    %c0_13 = arith.constant 0 : index
    %20 = memref.load %arg5[%c0_13] : memref<1xf32, #tpu.memory_space<smem>>
    %21 = vector.broadcast %20 : f32 to vector<16xf32>
    %22 = arith.addf %19, %21 : vector<16xf32>
    %23 = vector.shape_cast %22 : vector<16xf32> to vector<1x16xf32>
    %c0_14 = arith.constant 0 : index
    %c0_15 = arith.constant 0 : index
    %24 = vector.load %arg6[%c0_14, %c0_15] : memref<1x16xf32, #tpu.memory_space<vmem>>, vector<1x16xf32>
    tpu.vector_store %arg6[%c0_14, %c0_15], %23 {strides = array<i32>} : memref<1x16xf32, #tpu.memory_space<vmem>>, vector<1x16xf32>,
    return
  }
  func.func @transform_0(%arg0: i32) -> (i32, i32) {
    %c0_i32 = arith.constant 0 : i32
    %c0_i32_0 = arith.constant 0 : i32
    return %arg0, %c0_i32 : i32, i32
  }
  func.func @transform_1(%arg0: i32) -> (i32, i32) {
    %c0_i32 = arith.constant 0 : i32
    %c0_i32_0 = arith.constant 0 : i32
    %c0_i32_1 = arith.constant 0 : i32
    return %c0_i32, %c0_i32_0 : i32, i32
  }
  func.func @transform_2(%arg0: i32) -> (i32, i32) {
    %c0_i32 = arith.constant 0 : i32
    %c0_i32_0 = arith.constant 0 : i32
    %c0_i32_1 = arith.constant 0 : i32
    return %c0_i32, %c0_i32_0 : i32, i32
  }
  func.func @transform_3(%arg0: i32) -> (i32, i32) {
    %c0_i32 = arith.constant 0 : i32
    %c0_i32_0 = arith.constant 0 : i32
    %c0_i32_1 = arith.constant 0 : i32
    return %c0_i32, %c0_i32_0 : i32, i32
  }
  func.func @transform_4(%arg0: i32) -> i32 {
    %c0_i32 = arith.constant 0 : i32
    %c0_i32_0 = arith.constant 0 : i32
    return %c0_i32 : i32
  }
  func.func @transform_5(%arg0: i32) -> (i32, i32) {
    %c0_i32 = arith.constant 0 : i32
    %c0_i32_0 = arith.constant 0 : i32
    return %arg0, %c0_i32 : i32, i32
  }
}

</mosaic_0001>

<llo_original>
// kernel: tpu_custom_call.1
$region0: #{tpu_custom_call.1}
  #allocation0 [shape = 'u32[]', space=smem, size = 0x4, offset = 0x4, fixed_abs, tag = 'smem constant byte address 0x4 - core index']
  #allocation1 [shape = 'u32[144,128]{1,0:T(1,128)}', space=vmem, size = 0x12000, scoped, tag = 'internal scratch']
  #allocation2 [shape = 'f32[1]{0:T(128)S(6)}', space=smem, size = 0x200, scoped, tag = 'scoped memory for tpu_custom_call.1']
  %s0 = inlined_call_operand.hbm [shape: bf16[16,32], index: 0, kind: input, shape index: {}]
  %s1 = inlined_call_operand.hbm [shape: bf16[32,128], index: 1, kind: input, shape index: {}]
  %s2 = inlined_call_operand.hbm [shape: bf16[128,128], index: 2, kind: input, shape index: {}]
  %s3 = inlined_call_operand.vmem [shape: f32[3,128], index: 3, kind: input, shape index: {}]
  %s4 = inlined_call_operand.<no memory space> [shape: f32[1], index: 4, kind: input, shape index: {}]
  %s5 = inlined_call_operand.hbm [shape: f32[1,16], index: 5, kind: output, shape index: {}]
  %s6 = sld [smem:[#allocation0]]
  $region42: #{tpu_custom_call.1} parent=0
    _
  %s8 = ssub.s32 1, %s6
  %s9 = scalar_select 0, %s8, %s6
  %10 = sst [smem:[#allocation2]] %s4
  $region1: #{tpu_custom_call.1} parent=0
    #allocation3 [shape = 'u8[4096]{0}', space=vmem, size = 0x1000, scoped, tag = 'input window, operand 0, single buffered']
    #allocation4 [shape = 's32[1]{0}', space=sflag, size = 0x4, scoped, tag = 'scoped memory for tpu_custom_call.1']
    #allocation5 [shape = 's32[1]{0}', space=sflag, size = 0x4, scoped, tag = 'scoped memory for tpu_custom_call.1']
    #allocation6 [shape = 'u8[8192]{0}', space=vmem, size = 0x2000, scoped, tag = 'input window, operand 1, single buffered']
    #allocation7 [shape = 's32[1]{0}', space=sflag, size = 0x4, scoped, tag = 'scoped memory for tpu_custom_call.1']
    #allocation8 [shape = 'u8[32768]{0}', space=vmem, size = 0x8000, scoped, tag = 'input window, operand 2, single buffered']
    #allocation9 [shape = 'u8[512]{0}', space=vmem, size = 0x400, scoped, tag = 'output window, operand 0, single buffered']
    %11 = vsyncpa [#allocation4], 0
    %12 = vsyncpa [#allocation7], 0
    %13 = vsyncpa [#allocation5], 0
    // Predicated region
    $region2: #{tpu_custom_call.1} parent=1 // pred_check
      _
    $region3: #{tpu_custom_call.1} parent=1 // pred_check_branch
      %15 = sbr.rel (0) target = $region5
    $region4: #{tpu_custom_call.1} parent=1 // pred_region
      %s17 = ssub.s32 128, 128
      %18 = vsyncadd [#allocation4], %s17
      %s19 = sshll.u32 [#allocation3], 4
      %s20 = int_to_ptr.vmem [resolvable:$true] %s19
      %25 = dma.hbm_to_vmem [thread:$0]  %s0, 128, %s20, [#allocation4], 64, 64, 4
    $region5: #{tpu_custom_call.1} parent=1 // pred_fallthru
      _
    // Predicated region
    $region6: #{tpu_custom_call.1} parent=1 // pred_check
      _
    $region7: #{tpu_custom_call.1} parent=1 // pred_check_branch
      %27 = sbr.rel (0) target = $region9
    $region8: #{tpu_custom_call.1} parent=1 // pred_region
      %s29 = ssub.s32 256, 256
      %30 = vsyncadd [#allocation7], %s29
      %s31 = sshll.u32 [#allocation6], 4
      %s32 = int_to_ptr.vmem [resolvable:$true] %s31
      %37 = dma.hbm_to_vmem [thread:$0]  %s1, 256, %s32, [#allocation7], 64, 64, 4
    $region9: #{tpu_custom_call.1} parent=1 // pred_fallthru
      _
    // Predicated region
    $region10: #{tpu_custom_call.1} parent=1 // pred_check
      _
    $region11: #{tpu_custom_call.1} parent=1 // pred_check_branch
      %39 = sbr.rel (0) target = $region13
    $region12: #{tpu_custom_call.1} parent=1 // pred_region
      %s41 = ssub.s32 1024, 1024
      %42 = vsyncadd [#allocation7], %s41
      %s43 = sshll.u32 [#allocation8], 4
      %s44 = int_to_ptr.vmem [resolvable:$true] %s43
      %49 = dma.hbm_to_vmem [thread:$0]  %s2, 1024, %s44, [#allocation7], 64, 64, 4
    $region13: #{tpu_custom_call.1} parent=1 // pred_fallthru
      _
    // Predicated region
    $region14: #{tpu_custom_call.1} parent=1 // pred_check
      _
    $region15: #{tpu_custom_call.1} parent=1 // pred_check_branch
      %51 = sbr.rel (0) target = $region17
    $region16: #{tpu_custom_call.1} parent=1 // pred_region
      _
    $region17: #{tpu_custom_call.1} parent=1 // pred_fallthru
      _
    // Predicated region
    $region18: #{tpu_custom_call.1} parent=1 // pred_check
      _
    $region19: #{tpu_custom_call.1} parent=1 // pred_check_branch
      %53 = sbr.rel (0) target = $region21
    $region20: #{tpu_custom_call.1} parent=1 // pred_region
      _
    $region21: #{tpu_custom_call.1} parent=1 // pred_fallthru
      _
    // Predicated region
    $region22: #{tpu_custom_call.1} parent=1 // pred_check
      _
    $region23: #{tpu_custom_call.1} parent=1 // pred_check_branch
      %55 = sbr.rel (0) target = $region25
    $region24: #{tpu_custom_call.1} parent=1 // pred_region
      %56 = dma.done [#allocation4], 128
    $region25: #{tpu_custom_call.1} parent=1 // pred_fallthru
      _
    // Predicated region
    $region26: #{tpu_custom_call.1} parent=1 // pred_check
      _
    $region27: #{tpu_custom_call.1} parent=1 // pred_check_branch
      %58 = sbr.rel (0) target = $region29
    $region28: #{tpu_custom_call.1} parent=1 // pred_region
      %59 = dma.done [#allocation7], 256
    $region29: #{tpu_custom_call.1} parent=1 // pred_fallthru
      _
    // Predicated region
    $region30: #{tpu_custom_call.1} parent=1 // pred_check
      _
    $region31: #{tpu_custom_call.1} parent=1 // pred_check_branch
      %61 = sbr.rel (0) target = $region33
    $region32: #{tpu_custom_call.1} parent=1 // pred_region
      %62 = dma.done [#allocation7], 1024
    $region33: #{tpu_custom_call.1} parent=1 // pred_fallthru
      _
    %v64 = vld [vmem:[%s3] sm:$0x1]
    %v65 = vld [vmem:[%s3 + $0x1] sm:$0x1]
    %v66 = vld [vmem:[%s3 + $0x2] sm:$0x1]
    %v67 = vld [vmem:[#allocation3] sm:$0xf]
    %v68 = vld [vmem:[#allocation3 + $0x4] sm:$0xf]
    %v69 = vld [vmem:[#allocation6] sm:$0xf]
    %v70 = vld [vmem:[#allocation6 + $0x4] sm:$0xf]
    %v71 = vld [vmem:[#allocation6 + $0x8] sm:$0xf]
    %v72 = vld [vmem:[#allocation6 + $0xc] sm:$0xf]
    %v73 = vlaneseq
    %v74 = vshrl.u32 %v73, 7
    %v75 = vsub.s32 0, %v74
    %v76 = vrot.slane %v64, %v75
    %v79 = vunpack.c.l.b16 %v67
    %v80 = vunpack.c.l.b16 %v68
    %v81 = vpack.c.b16 %v80, %v79
    %v86 = vunpack.c.l.b16 %v69
    %v87 = vunpack.c.l.b16 %v70
    %v88 = vunpack.c.l.b16 %v71
    %v89 = vunpack.c.l.b16 %v72
    %v90 = vpack.c.b16 %v87, %v86
    %v91 = vpack.c.b16 %v89, %v88
    %vm94 = vcmask 261120
    %v96 = vsel %vm94, %v81, 0
    %98 = vmatprep.subr.bf16.mxu0 0
    %99 = vmatpush1.bf16.msra.mxu0 %v90
    %100 = vmatprep.subr.bf16.mxu0 0
    %101 = vmatpush1.bf16.msra.mxu0 %v91
    %102 = vmatprep.subr.bf16.mxu0 0
    %103 = vmatpush1.bf16.msra.mxu0 0
    %104 = vmatprep.subr.bf16.mxu0 0
    %105 = vmatpush1.bf16.msra.mxu0 0
    %106 = vmatprep.subr.bf16.mxu0 0
    %107 = vmatpush1.bf16.msra.mxu0 0
    %108 = vmatprep.subr.bf16.mxu0 0
    %109 = vmatpush1.bf16.msra.mxu0 0
    %110 = vmatprep.subr.bf16.mxu0 0
    %111 = vmatpush1.bf16.msra.mxu0 0
    %112 = vmatprep.subr.bf16.mxu0 0
    %113 = vmatpush1.bf16.msra.mxu0 0
    %114 = vmatprep.subr.bf16.mxu0 0
    %115 = vmatpush1.bf16.msra.mxu0 0
    %116 = vmatprep.subr.bf16.mxu0 0
    %117 = vmatpush1.bf16.msra.mxu0 0
    %118 = vmatprep.subr.bf16.mxu0 0
    %119 = vmatpush1.bf16.msra.mxu0 0
    %120 = vmatprep.subr.bf16.mxu0 0
    %121 = vmatpush1.bf16.msra.mxu0 0
    %122 = vmatprep.subr.bf16.mxu0 0
    %123 = vmatpush1.bf16.msra.mxu0 0
    %124 = vmatprep.subr.bf16.mxu0 0
    %125 = vmatpush1.bf16.msra.mxu0 0
    %126 = vmatprep.subr.bf16.mxu0 0
    %127 = vmatpush1.bf16.msra.mxu0 0
    %128 = vmatprep.subr.bf16.mxu0 0
    %129 = vmatpush1.bf16.msra.mxu0 0
    %130 = vmatprep.mubr.bf16.mxu0 0
    %131 = vmatmul.mubr.bf16.gmra.mrb[0].mxu0 %v96
    %v132 = vpop.f32.mrb[0].mxu0
    %v133 = vadd.f32 %v76, %v132
    %v134 = vpop.f32.mrb[0].mxu0
    %v135 = vpop.f32.mrb[0].mxu0
    %v136 = vadd.f32 %v76, %v135
    %v137 = vpop.f32.mrb[0].mxu0
    %138 = vdwg.mxu0
    %v139 = vmax.f32 %v133, 0.0
    %v140 = vmax.f32 %v136, 0.0
    %v141 = vpack.c.bf16 %v140, %v139
    %v142 = vld [vmem:[#allocation8] sm:$0xf]
    %v143 = vld [vmem:[#allocation8 + $0x4] sm:$0xf]
    %v144 = vld [vmem:[#allocation8 + $0x8] sm:$0xf]
    %v145 = vld [vmem:[#allocation8 + $0xc] sm:$0xf]
    %v146 = vld [vmem:[#allocation8 + $0x10] sm:$0xf]
    %v147 = vld [vmem:[#allocation8 + $0x14] sm:$0xf]
    %v148 = vld [vmem:[#allocation8 + $0x18] sm:$0xf]
    %v149 = vld [vmem:[#allocation8 + $0x1c] sm:$0xf]
    %v150 = vld [vmem:[#allocation8 + $0x20] sm:$0xf]
    %v151 = vld [vmem:[#allocation8 + $0x24] sm:$0xf]
    %v152 = vld [vmem:[#allocation8 + $0x28] sm:$0xf]
    %v153 = vld [vmem:[#allocation8 + $0x2c] sm:$0xf]
    %v154 = vld [vmem:[#allocation8 + $0x30] sm:$0xf]
    %v155 = vld [vmem:[#allocation8 + $0x34] sm:$0xf]
    %v156 = vld [vmem:[#allocation8 + $0x38] sm:$0xf]
    %v157 = vld [vmem:[#allocation8 + $0x3c] sm:$0xf]
    %v158 = vlaneseq
    %v159 = vshrl.u32 %v158, 7
    %v160 = vsub.s32 0, %v159
    %v161 = vrot.slane %v65, %v160
    %v178 = vunpack.c.l.b16 %v142
    %v179 = vunpack.c.l.b16 %v143
    %v180 = vunpack.c.l.b16 %v144
    %v181 = vunpack.c.l.b16 %v145
    %v182 = vunpack.c.l.b16 %v146
    %v183 = vunpack.c.l.b16 %v147
    %v184 = vunpack.c.l.b16 %v148
    %v185 = vunpack.c.l.b16 %v149
    %v186 = vunpack.c.l.b16 %v150
    %v187 = vunpack.c.l.b16 %v151
    %v188 = vunpack.c.l.b16 %v152
    %v189 = vunpack.c.l.b16 %v153
    %v190 = vunpack.c.l.b16 %v154
    %v191 = vunpack.c.l.b16 %v155
    %v192 = vunpack.c.l.b16 %v156
    %v193 = vunpack.c.l.b16 %v157
    %v194 = vpack.c.b16 %v179, %v178
    %v195 = vpack.c.b16 %v181, %v180
    %v196 = vpack.c.b16 %v183, %v182
    %v197 = vpack.c.b16 %v185, %v184
    %v198 = vpack.c.b16 %v187, %v186
    %v199 = vpack.c.b16 %v189, %v188
    %v200 = vpack.c.b16 %v191, %v190
    %v201 = vpack.c.b16 %v193, %v192
    %210 = vmatprep.subr.bf16.mxu0 0
    %211 = vmatpush1.bf16.msra.mxu0 %v194
    %212 = vmatprep.subr.bf16.mxu0 0
    %213 = vmatpush1.bf16.msra.mxu0 %v195
    %214 = vmatprep.subr.bf16.mxu0 0
    %215 = vmatpush1.bf16.msra.mxu0 %v196
    %216 = vmatprep.subr.bf16.mxu0 0
    %217 = vmatpush1.bf16.msra.mxu0 %v197
    %218 = vmatprep.subr.bf16.mxu0 0
    %219 = vmatpush1.bf16.msra.mxu0 %v198
    %220 = vmatprep.subr.bf16.mxu0 0
    %221 = vmatpush1.bf16.msra.mxu0 %v199
    %222 = vmatprep.subr.bf16.mxu0 0
    %223 = vmatpush1.bf16.msra.mxu0 %v200
    %224 = vmatprep.subr.bf16.mxu0 0
    %225 = vmatpush1.bf16.msra.mxu0 %v201
    %226 = vmatprep.subr.bf16.mxu0 0
    %227 = vmatpush1.bf16.msra.mxu0 0
    %228 = vmatprep.subr.bf16.mxu0 0
    %229 = vmatpush1.bf16.msra.mxu0 0
    %230 = vmatprep.subr.bf16.mxu0 0
    %231 = vmatpush1.bf16.msra.mxu0 0
    %232 = vmatprep.subr.bf16.mxu0 0
    %233 = vmatpush1.bf16.msra.mxu0 0
    %234 = vmatprep.subr.bf16.mxu0 0
    %235 = vmatpush1.bf16.msra.mxu0 0
    %236 = vmatprep.subr.bf16.mxu0 0
    %237 = vmatpush1.bf16.msra.mxu0 0
    %238 = vmatprep.subr.bf16.mxu0 0
    %239 = vmatpush1.bf16.msra.mxu0 0
    %240 = vmatprep.subr.bf16.mxu0 0
    %241 = vmatpush1.bf16.msra.mxu0 0
    %242 = vmatprep.mubr.bf16.mxu0 0
    %243 = vmatmul.mubr.bf16.gmra.mrb[0].mxu0 %v141
    %v244 = vpop.f32.mrb[0].mxu0
    %v245 = vadd.f32 %v161, %v244
    %v246 = vpop.f32.mrb[0].mxu0
    %v247 = vpop.f32.mrb[0].mxu0
    %v248 = vadd.f32 %v161, %v247
    %v249 = vpop.f32.mrb[0].mxu0
    %250 = vdwg.mxu0
    %v251 = vmax.f32 %v245, 0.0
    %v252 = vmax.f32 %v248, 0.0
    %v253 = vlaneseq
    %v254 = vshrl.u32 %v253, 7
    %v255 = vsub.s32 0, %v254
    %v256 = vrot.slane %v66, %v255
    %v257 = vmul.f32 %v251, %v256
    %v258 = vmul.f32 %v252, %v256
    %259 = vadd.xlane.f32.xlu0 %v257
    %v260 = vpop.xlane.xlu0 %259
    %261 = vadd.xlane.f32.xlu0 %v258
    %v262 = vpop.xlane.xlu0 %261
    %s263 = sld [smem:[#allocation2]]
    %v264 = vstv %s263
    %v265 = vadd.f32 %v260, %v264
    %v266 = vadd.f32 %v262, %v264
    %v269 = vlaneseq
    %v270 = vand.u32 %v269, 127
    %v271 = vlaneseq
    %v272 = vshrl.u32 %v271, 7
    %v273 = vsub.s32 %v270, %v272
    %v274 = vrot.slane %v265, %v273
    %v275 = vadd.s32 %v270, 4294967288
    %v276 = vlaneseq
    %v277 = vshrl.u32 %v276, 7
    %v278 = vsub.s32 %v275, %v277
    %v279 = vrot.slane %v266, %v278
    %vm280 = vcmask 130112
    %v281 = vsel %vm280, %v279, %v274
    %vm283 = vcmask 122880
    %284 = vst.msk [vmem:[#allocation9] sm:$0x1] %vm283, %v281
    // Predicated region
    $region34: #{tpu_custom_call.1} parent=1 // pred_check
      _
    $region35: #{tpu_custom_call.1} parent=1 // pred_check_branch
      %286 = sbr.rel (0) target = $region37
    $region36: #{tpu_custom_call.1} parent=1 // pred_region
      %s288 = ssub.s32 16, 16
      %289 = vsyncadd [#allocation5], %s288
      %s291 = sshll.u32 [#allocation9], 4
      %s292 = int_to_ptr.vmem [resolvable:$true] %s291
      %294 = dma.vmem_to_hbm [thread:$0]  %s292, 16, %s5, [#allocation5]
    $region37: #{tpu_custom_call.1} parent=1 // pred_fallthru
      _
    // Predicated region
    $region38: #{tpu_custom_call.1} parent=1 // pred_check
      _
    $region39: #{tpu_custom_call.1} parent=1 // pred_check_branch
      %296 = sbr.rel (0) target = $region41
    $region40: #{tpu_custom_call.1} parent=1 // pred_region
      %297 = dma.done [#allocation5], 16
    $region41: #{tpu_custom_call.1} parent=1 // pred_fallthru
      _
    %298 = vsyncpa [#allocation4], 1
    %299 = vsyncpa [#allocation7], 1
    %300 = vsyncpa [#allocation5], 1

</llo_original>
